<compile_context>
chip_gen: v5e
topology: v5e:2x2
jax: 0.10.0
libtpu: 0.0.40
codegen_flags: <defaults>
</compile_context>

<pallas_src>
import jax
import jax.numpy as jnp
from jax.experimental import pallas as pl
from jax.experimental.pallas import tpu as pltpu


def _round_up(x, m):
    return (x + m - 1) // m * m


def capsule_kernel(h_ref, len_ref, av_ref, w_ref, b_ref, prob_ref, rsp_ref):
    # h_ref:    (TB, T, D)  hidden states (native dtype) for this batch tile
    # len_ref:  (1, TB)     int32 valid lengths (lane-dense)
    # av_ref:   (1, D)      attention vector
    # w_ref:    (1, D)      linear_prob weight (PyTorch (1, D) layout)
    # b_ref:    (1, 1)      linear_prob bias (SMEM scalar)
    # prob_ref: (1, TB)     sigmoid probability (lane-dense output)
    # rsp_ref:  (TB, D)     prob * r_s
    TB, T, D = h_ref.shape
    h = h_ref[...]                                              # native dtype, no eager cast

    # ---- attention logits: VPU multiply + lane reduce over D (no MXU M=1 matmuls) ----
    av = av_ref[...].reshape(1, 1, D).astype(jnp.float32)       # (1, 1, D)
    s = jnp.sum(h.astype(jnp.float32) * av, axis=-1)            # (TB, T) f32

    # ---- length mask + per-row masked softmax (shift-invariant == global-max reference) ----
    ids = jax.lax.broadcasted_iota(jnp.int32, (TB, T), 1)       # (TB, T)
    lens = len_ref[...].reshape(TB, 1)                          # (1,TB) -> (TB,1)
    valid = ids < lens                                          # (TB, T) bool
    s = jnp.where(valid, s, jnp.float32(-1e30))
    m = jnp.max(s, axis=-1, keepdims=True)                      # (TB, 1)
    p = jnp.exp(s - m) * valid.astype(jnp.float32)              # (TB, T)
    denom = jnp.maximum(jnp.sum(p, axis=-1, keepdims=True), jnp.float32(1e-30))
    att = p / denom                                             # (TB, T); len==0 rows -> all zeros

    # ---- attention-weighted representation: VPU multiply + sublane reduce over T ----
    r_s = jnp.sum(att[:, :, None] * h.astype(jnp.float32), axis=1)   # (TB, D) f32

    # ---- linear_prob + sigmoid (final_dropout == identity in eval mode) ----
    w = w_ref[...].astype(jnp.float32)                          # (1, D)
    logit = jnp.sum(r_s * w, axis=-1, keepdims=True) + b_ref[0, 0]   # (TB, 1)
    prob = jax.nn.sigmoid(logit)                                # (TB, 1)

    prob_ref[...] = prob.reshape(1, TB).astype(prob_ref.dtype)
    rsp_ref[...] = (prob * r_s).astype(rsp_ref.dtype)


def capsule_forward(matrix_hidden_pad, len_hidden_pad, attention_vector, w, b,
                    *, block_batch=None, target_block_bytes=4 * 1024 * 1024):
    """matrix_hidden_pad: (B, T, D), len_hidden_pad: (B,) int, attention_vector: (D,),
       w: (1, D) (PyTorch Linear layout), b: (1,). Returns (prob (B,1), r_s_prob (B,D))."""
    B, T, D = matrix_hidden_pad.shape
    itemsize = jnp.dtype(matrix_hidden_pad.dtype).itemsize

    # ---- batch tile: single exact block if it fits the target, else 128-aligned tiles ----
    if block_batch is not None:
        tb = max(1, int(block_batch))
    else:
        per_row = max(T * D * itemsize, 1)
        tb = max(128, (target_block_bytes // per_row) // 128 * 128)
    if tb >= B:
        tb = B                                    # one block, exact fit: no padding anywhere
    else:
        tb = max(128, tb // 128 * 128)            # lane-aligned; guarantees >= 2 grid steps

    num_blocks = pl.cdiv(B, tb)
    B_pad = num_blocks * tb

    # Only the tiny lens vector is padded (so overhanging h rows are masked to zero weight).
    lens = jnp.zeros((1, B_pad), jnp.int32).at[0, :B].set(
        jnp.asarray(len_hidden_pad, jnp.int32).reshape(B))
    av = jnp.asarray(attention_vector, jnp.float32).reshape(1, D)
    w_r = jnp.asarray(w, jnp.float32).reshape(1, D)
    b_r = jnp.asarray(b, jnp.float32).reshape(1, 1)

    # Cost estimate reflecting the padded (8,128) HBM layout.
    d_pad = _round_up(D, 128)
    t_pad = _round_up(T, 8)
    cost = pl.CostEstimate(
        flops=4 * B * T * D + 4 * B * D,
        transcendentals=B * T + B,
        bytes_accessed=(B * t_pad * d_pad * itemsize      # h read
                        + _round_up(B, 8) * d_pad * 4     # rsp write (f32)
                        + _round_up(B_pad, 128) * 4 * 2   # lens read + prob write
                        + 2 * 8 * d_pad * 4),             # av + w
    )

    prob_row, r_s_prob = pl.pallas_call(
        capsule_kernel,
        out_shape=(
            jax.ShapeDtypeStruct((1, B), jnp.float32),
            jax.ShapeDtypeStruct((B, D), jnp.float32),
        ),
        grid=(num_blocks,),
        in_specs=[
            pl.BlockSpec((tb, T, D), lambda i: (i, 0, 0)),
            pl.BlockSpec((1, tb), lambda i: (0, i)),
            pl.BlockSpec((1, D), lambda i: (0, 0)),
            pl.BlockSpec((1, D), lambda i: (0, 0)),
            pl.BlockSpec(memory_space=pltpu.MemorySpace.SMEM),
        ],
        out_specs=(
            pl.BlockSpec((1, tb), lambda i: (0, i)),
            pl.BlockSpec((tb, D), lambda i: (i, 0)),
        ),
        compiler_params=pltpu.CompilerParams(
            dimension_semantics=("parallel",),
            vmem_limit_bytes=48 * 1024 * 1024,
        ),
        cost_estimate=cost,
    )(matrix_hidden_pad, lens, av, w_r, b_r)

    prob = prob_row.reshape(B, 1)     # (B, 1)
    return prob, r_s_prob             # (B, 1), (B, D)


def capsule_reference(matrix_hidden_pad, len_hidden_pad, attention_vector, w, b):
    """Pure-JAX reference (mirrors the PyTorch module)."""
    h = matrix_hidden_pad.astype(jnp.float32)
    B, T, D = h.shape
    logits = jnp.einsum("btd,d->bt", h, attention_vector)
    unnorm = jnp.exp(logits - jnp.max(logits))
    mask = (jnp.arange(T)[None, :] < len_hidden_pad[:, None]).astype(jnp.float32)
    masked = unnorm * mask
    att = masked / jnp.sum(masked, axis=1, keepdims=True)
    r_s = jnp.einsum("bt,btd->bd", att, h)
    prob = jax.nn.sigmoid(r_s @ w.reshape(1, D).T + b.reshape(1, 1))
    return prob, prob * r_s


if __name__ == "__main__":
    # Small shapes consistent with the module: batch=2, seq=8, dim_vector=32.
    B, T, D = 2, 8, 32
    key = jax.random.PRNGKey(0)
    k_h, k_av, k_w, k_b = jax.random.split(key, 4)

    matrix_hidden_pad = jax.random.normal(k_h, (B, T, D), dtype=jnp.float32)
    len_hidden_pad = jnp.array([8, 5], dtype=jnp.int32)

    attention_vector = jax.random.uniform(k_av, (D,), minval=-0.01, maxval=0.01,
                                          dtype=jnp.float32)
    bound = 1.0 / jnp.sqrt(D)
    w = jax.random.uniform(k_w, (1, D), minval=-bound, maxval=bound, dtype=jnp.float32)
    b = jax.random.uniform(k_b, (1,), minval=-bound, maxval=bound, dtype=jnp.float32)

    prob, r_s_prob = capsule_forward(matrix_hidden_pad, len_hidden_pad,
                                     attention_vector, w, b)
    jax.block_until_ready((prob, r_s_prob))

    prob_ref, r_s_prob_ref = capsule_reference(matrix_hidden_pad, len_hidden_pad,
                                               attention_vector, w, b)
    assert prob.shape == (B, 1) and r_s_prob.shape == (B, D)
    assert jnp.allclose(prob, prob_ref, rtol=1e-5, atol=1e-5)
    assert jnp.allclose(r_s_prob, r_s_prob_ref, rtol=1e-5, atol=1e-5)

    print("KERNEL_OK")
</pallas_src>

<mosaic_0001>
module attributes {stable_mosaic.version = 11 : i64} {
  func.func @capsule_kernel(%arg0: i32, %arg1: memref<2x8x32xf32, #tpu.memory_space<vmem>>, %arg2: memref<1x2xi32, #tpu.memory_space<vmem>>, %arg3: memref<1x32xf32, #tpu.memory_space<vmem>>, %arg4: memref<1x32xf32, #tpu.memory_space<vmem>>, %arg5: memref<1x1xf32, #tpu.memory_space<smem>>, %arg6: memref<1x2xf32, #tpu.memory_space<vmem>>, %arg7: memref<2x32xf32, #tpu.memory_space<vmem>>) attributes {dimension_semantics = [#tpu.dimension_semantics<parallel>], iteration_bounds = array<i64: 1>, scalar_prefetch = 0 : i64, scratch_operands = 0 : i64, tpu.core_type = #tpu.core_type<tc>, window_params = [{transform_indices = @transform_0, window_bounds = array<i64: 2, 8, 32>}, {transform_indices = @transform_1, window_bounds = array<i64: 1, 2>}, {pipeline_mode = #tpu.pipeline_mode<synchronous>, transform_indices = @transform_2, window_bounds = array<i64: 1, 32>}, {pipeline_mode = #tpu.pipeline_mode<synchronous>, transform_indices = @transform_3, window_bounds = array<i64: 1, 32>}, {transform_indices = @transform_4, window_bounds = array<i64: 1, 1>}, {transform_indices = @transform_5, window_bounds = array<i64: 1, 2>}, {transform_indices = @transform_6, window_bounds = array<i64: 2, 32>}]} {
    %c0 = arith.constant 0 : index
    %c0_0 = arith.constant 0 : index
    %c0_1 = arith.constant 0 : index
    %0 = vector.load %arg1[%c0, %c0_0, %c0_1] : memref<2x8x32xf32, #tpu.memory_space<vmem>>, vector<2x8x32xf32>
    %c0_2 = arith.constant 0 : index
    %c0_3 = arith.constant 0 : index
    %1 = vector.load %arg3[%c0_2, %c0_3] : memref<1x32xf32, #tpu.memory_space<vmem>>, vector<1x32xf32>
    %2 = vector.shape_cast %1 : vector<1x32xf32> to vector<1x1x32xf32>
    %3 = vector.broadcast %2 : vector<1x1x32xf32> to vector<2x8x32xf32>
    %4 = arith.mulf %0, %3 : vector<2x8x32xf32>
    %cst = arith.constant dense<0.000000e+00> : vector<2x8xf32>
    %5 = vector.multi_reduction <add>, %4, %cst [2] : vector<2x8x32xf32> to vector<2x8xf32>
    %6 = tpu.iota {dimensions = array<i32: 1>} : vector<2x8xi32>
    %c0_4 = arith.constant 0 : index
    %c0_5 = arith.constant 0 : index
    %7 = vector.load %arg2[%c0_4, %c0_5] : memref<1x2xi32, #tpu.memory_space<vmem>>, vector<1x2xi32>
    %8 = vector.shape_cast %7 : vector<1x2xi32> to vector<2x1xi32>
    %9 = vector.broadcast %8 : vector<2x1xi32> to vector<2x8xi32>
    %10 = arith.cmpi slt, %6, %9 : vector<2x8xi32>
    %cst_6 = arith.constant -1.000000e+30 : f32
    %11 = vector.broadcast %cst_6 : f32 to vector<2x8xf32>
    %12 = arith.select %10, %5, %11 : vector<2x8xi1>, vector<2x8xf32>
    %cst_7 = arith.constant dense<0xFF800000> : vector<2xf32>
    %13 = vector.multi_reduction <maximumf>, %12, %cst_7 [1] : vector<2x8xf32> to vector<2xf32>
    %14 = vector.shape_cast %13 : vector<2xf32> to vector<2x1xf32>
    %15 = vector.broadcast %14 : vector<2x1xf32> to vector<2x8xf32>
    %16 = arith.subf %12, %15 : vector<2x8xf32>
    %17 = math.exp %16 : vector<2x8xf32>
    %18 = arith.extui %10 : vector<2x8xi1> to vector<2x8xi32>
    %19 = arith.sitofp %18 : vector<2x8xi32> to vector<2x8xf32>
    %20 = arith.mulf %17, %19 : vector<2x8xf32>
    %cst_8 = arith.constant dense<0.000000e+00> : vector<2xf32>
    %21 = vector.multi_reduction <add>, %20, %cst_8 [1] : vector<2x8xf32> to vector<2xf32>
    %22 = vector.shape_cast %21 : vector<2xf32> to vector<2x1xf32>
    %cst_9 = arith.constant 1.000000e-30 : f32
    %23 = vector.broadcast %cst_9 : f32 to vector<2x1xf32>
    %24 = arith.maximumf %22, %23 : vector<2x1xf32>
    %25 = vector.broadcast %24 : vector<2x1xf32> to vector<2x8xf32>
    %26 = arith.divf %20, %25 : vector<2x8xf32>
    %27 = vector.shape_cast %26 : vector<2x8xf32> to vector<2x8x1xf32>
    %28 = vector.broadcast %27 : vector<2x8x1xf32> to vector<2x8x32xf32>
    %29 = arith.mulf %28, %0 : vector<2x8x32xf32>
    %cst_10 = arith.constant dense<0.000000e+00> : vector<2x32xf32>
    %30 = vector.multi_reduction <add>, %29, %cst_10 [1] : vector<2x8x32xf32> to vector<2x32xf32>
    %c0_11 = arith.constant 0 : index
    %c0_12 = arith.constant 0 : index
    %31 = vector.load %arg4[%c0_11, %c0_12] : memref<1x32xf32, #tpu.memory_space<vmem>>, vector<1x32xf32>
    %32 = vector.broadcast %31 : vector<1x32xf32> to vector<2x32xf32>
    %33 = arith.mulf %30, %32 : vector<2x32xf32>
    %cst_13 = arith.constant dense<0.000000e+00> : vector<2xf32>
    %34 = vector.multi_reduction <add>, %33, %cst_13 [1] : vector<2x32xf32> to vector<2xf32>
    %35 = vector.shape_cast %34 : vector<2xf32> to vector<2x1xf32>
    %c0_14 = arith.constant 0 : index
    %c0_15 = arith.constant 0 : index
    %36 = memref.load %arg5[%c0_14, %c0_15] : memref<1x1xf32, #tpu.memory_space<smem>>
    %37 = vector.broadcast %36 : f32 to vector<2x1xf32>
    %38 = arith.addf %35, %37 : vector<2x1xf32>
    %39 = arith.negf %38 : vector<2x1xf32>
    %40 = math.exp %39 : vector<2x1xf32>
    %cst_16 = arith.constant 1.000000e+00 : f32
    %41 = vector.broadcast %cst_16 : f32 to vector<2x1xf32>
    %42 = arith.addf %41, %40 : vector<2x1xf32>
    %43 = arith.divf %41, %42 : vector<2x1xf32>
    %44 = vector.shape_cast %43 : vector<2x1xf32> to vector<1x2xf32>
    %c0_17 = arith.constant 0 : index
    %c0_18 = arith.constant 0 : index
    %45 = vector.load %arg6[%c0_17, %c0_18] : memref<1x2xf32, #tpu.memory_space<vmem>>, vector<1x2xf32>
    tpu.vector_store %arg6[%c0_17, %c0_18], %44 {strides = array<i32>} : memref<1x2xf32, #tpu.memory_space<vmem>>, vector<1x2xf32>,
    %46 = vector.broadcast %43 : vector<2x1xf32> to vector<2x32xf32>
    %47 = arith.mulf %46, %30 : vector<2x32xf32>
    %c0_19 = arith.constant 0 : index
    %c0_20 = arith.constant 0 : index
    %48 = vector.load %arg7[%c0_19, %c0_20] : memref<2x32xf32, #tpu.memory_space<vmem>>, vector<2x32xf32>
    tpu.vector_store %arg7[%c0_19, %c0_20], %47 {strides = array<i32>} : memref<2x32xf32, #tpu.memory_space<vmem>>, vector<2x32xf32>,
    return
  }
  func.func @transform_0(%arg0: i32) -> (i32, i32, i32) {
    %c0_i32 = arith.constant 0 : i32
    %c0_i32_0 = arith.constant 0 : i32
    %c0_i32_1 = arith.constant 0 : i32
    return %arg0, %c0_i32, %c0_i32_0 : i32, i32, i32
  }
  func.func @transform_1(%arg0: i32) -> (i32, i32) {
    %c0_i32 = arith.constant 0 : i32
    %c0_i32_0 = arith.constant 0 : i32
    return %c0_i32, %arg0 : i32, i32
  }
  func.func @transform_2(%arg0: i32) -> (i32, i32) {
    %c0_i32 = arith.constant 0 : i32
    %c0_i32_0 = arith.constant 0 : i32
    %c0_i32_1 = arith.constant 0 : i32
    return %c0_i32, %c0_i32_0 : i32, i32
  }
  func.func @transform_3(%arg0: i32) -> (i32, i32) {
    %c0_i32 = arith.constant 0 : i32
    %c0_i32_0 = arith.constant 0 : i32
    %c0_i32_1 = arith.constant 0 : i32
    return %c0_i32, %c0_i32_0 : i32, i32
  }
  func.func @transform_4(%arg0: i32) -> (i32, i32) {
    %c0_i32 = arith.constant 0 : i32
    %c0_i32_0 = arith.constant 0 : i32
    %c0_i32_1 = arith.constant 0 : i32
    return %c0_i32, %c0_i32_0 : i32, i32
  }
  func.func @transform_5(%arg0: i32) -> (i32, i32) {
    %c0_i32 = arith.constant 0 : i32
    %c0_i32_0 = arith.constant 0 : i32
    return %c0_i32, %arg0 : i32, i32
  }
  func.func @transform_6(%arg0: i32) -> (i32, i32) {
    %c0_i32 = arith.constant 0 : i32
    %c0_i32_0 = arith.constant 0 : i32
    return %arg0, %c0_i32 : i32, i32
  }
}

</mosaic_0001>

<llo_original>
// kernel: tpu_custom_call.1
$region0: #{tpu_custom_call.1}
  #allocation0 [shape = 'u32[]', space=smem, size = 0x4, offset = 0x4, fixed_abs, tag = 'smem constant byte address 0x4 - core index']
  #allocation1 [shape = 'u32[72,128]{1,0:T(1,128)}', space=vmem, size = 0x9000, scoped, tag = 'internal scratch']
  #allocation2 [shape = 'f32[1,1]{1,0:T(1,128)S(6)}', space=smem, size = 0x200, scoped, tag = 'scoped memory for tpu_custom_call.1']
  %s0 = inlined_call_operand.hbm [shape: f32[2,8,32], index: 0, kind: input, shape index: {}]
  %s1 = inlined_call_operand.vmem [shape: s32[1,2], index: 1, kind: input, shape index: {}]
  %s2 = inlined_call_operand.vmem [shape: f32[1,32], index: 2, kind: input, shape index: {}]
  %s3 = inlined_call_operand.vmem [shape: f32[1,32], index: 3, kind: input, shape index: {}]
  %s4 = inlined_call_operand.<no memory space> [shape: f32[1,1], index: 4, kind: input, shape index: {}]
  %s5 = inlined_call_operand.hbm [shape: f32[1,2], index: 5, kind: output, shape index: {0}]
  %s6 = inlined_call_operand.hbm [shape: f32[2,32], index: 6, kind: output, shape index: {1}]
  %7 = xla_tuple %s5, %s6
  %s8 = sld [smem:[#allocation0]]
  $region42: #{tpu_custom_call.1} parent=0
    _
  %s10 = ssub.s32 1, %s8
  %s11 = scalar_select 0, %s10, %s8
  %12 = sst [smem:[#allocation2]] %s4
  $region1: #{tpu_custom_call.1} parent=0
    #allocation3 [shape = 'u8[8192]{0}', space=vmem, size = 0x2000, scoped, tag = 'input window, operand 0, single buffered']
    #allocation4 [shape = 's32[1]{0}', space=sflag, size = 0x4, scoped, tag = 'scoped memory for tpu_custom_call.1']
    #allocation5 [shape = 's32[1]{0}', space=sflag, size = 0x4, scoped, tag = 'scoped memory for tpu_custom_call.1']
    #allocation6 [shape = 'u8[512]{0}', space=vmem, size = 0x400, scoped, tag = 'output window, operand 0, single buffered']
    #allocation7 [shape = 'u8[1024]{0}', space=vmem, size = 0x400, scoped, tag = 'output window, operand 1, single buffered']
    #allocation8 [shape = 's32[1]{0}', space=sflag, size = 0x4, scoped, tag = 'scoped memory for tpu_custom_call.1']
    %13 = vsyncpa [#allocation4], 0
    %14 = vsyncpa [#allocation5], 0
    %15 = vsyncpa [#allocation8], 0
    // Predicated region
    $region2: #{tpu_custom_call.1} parent=1 // pred_check
      _
    $region3: #{tpu_custom_call.1} parent=1 // pred_check_branch
      %17 = sbr.rel (0) target = $region5
    $region4: #{tpu_custom_call.1} parent=1 // pred_region
      %19 = vsyncadd [#allocation4], 0
      %s20 = sshll.u32 %s0, 4
      %s21 = int_to_ptr.hbm [resolvable:$true] %s20
      %s22 = sshll.u32 [#allocation3], 4
      %s23 = int_to_ptr.vmem [resolvable:$true] %s22
      %28 = dma.hbm_to_vmem [thread:$0]  %s21, 256, %s23, [#allocation4], 128, 128, 8
    $region5: #{tpu_custom_call.1} parent=1 // pred_fallthru
      _
    // Predicated region
    $region6: #{tpu_custom_call.1} parent=1 // pred_check
      _
    $region7: #{tpu_custom_call.1} parent=1 // pred_check_branch
      %30 = sbr.rel (0) target = $region9
    $region8: #{tpu_custom_call.1} parent=1 // pred_region
      _
    $region9: #{tpu_custom_call.1} parent=1 // pred_fallthru
      _
    // Predicated region
    $region10: #{tpu_custom_call.1} parent=1 // pred_check
      _
    $region11: #{tpu_custom_call.1} parent=1 // pred_check_branch
      %32 = sbr.rel (0) target = $region13
    $region12: #{tpu_custom_call.1} parent=1 // pred_region
      _
    $region13: #{tpu_custom_call.1} parent=1 // pred_fallthru
      _
    // Predicated region
    $region14: #{tpu_custom_call.1} parent=1 // pred_check
      _
    $region15: #{tpu_custom_call.1} parent=1 // pred_check_branch
      %34 = sbr.rel (0) target = $region17
    $region16: #{tpu_custom_call.1} parent=1 // pred_region
      _
    $region17: #{tpu_custom_call.1} parent=1 // pred_fallthru
      _
    // Predicated region
    $region18: #{tpu_custom_call.1} parent=1 // pred_check
      _
    $region19: #{tpu_custom_call.1} parent=1 // pred_check_branch
      %36 = sbr.rel (0) target = $region21
    $region20: #{tpu_custom_call.1} parent=1 // pred_region
      _
    $region21: #{tpu_custom_call.1} parent=1 // pred_fallthru
      _
    // Predicated region
    $region22: #{tpu_custom_call.1} parent=1 // pred_check
      _
    $region23: #{tpu_custom_call.1} parent=1 // pred_check_branch
      %38 = sbr.rel (0) target = $region25
    $region24: #{tpu_custom_call.1} parent=1 // pred_region
      %40 = dma.done [#allocation4], 256
    $region25: #{tpu_custom_call.1} parent=1 // pred_fallthru
      _
    %v41 = vld [vmem:[#allocation3] sm:$0xff]
    %v42 = vld [vmem:[#allocation3 + $0x8] sm:$0xff]
    %v43 = vld [vmem:[%s2] sm:$0x1]
    %v45 = vperm.slane %v43, 0
    %v47 = vmul.f32 %v41, %v45
    %v48 = vmul.f32 %v42, %v45
    %vm49 = vcmask 261120
    %v50 = vsel %vm49, %v47, 0.0
    %51 = vadd.xlane.f32.xlu0 %v50
    %v52 = vpop.xlane.xlu0 %51
    %v53 = vsel %vm49, %v48, 0.0
    %54 = vadd.xlane.f32.xlu0 %v53
    %v55 = vpop.xlane.xlu0 %54
    %v56 = vlaneseq
    %v57 = vand.u32 %v56, 127
    %v58 = vld [vmem:[%s1] sm:$0x1]
    %v59 = vperm.slane %v58, 0
    %v60 = vlaneseq
    %v61 = vshrl.u32 %v60, 7
    %63 = vset.pattern.permute.xlu0 %v61
    %64 = vperm.xlu0 %63, %v59
    %v65 = vpop.permute.xlu0 %64
    %vm66 = vcmp.lt.s32.totalorder %v57, %v65
    %v69 = vperm.slane %v52, %v57
    %v70 = vperm.slane %v55, %v57
    %vm71 = vcmask 1041409
    %v72 = vsel %vm71, %v70, %v69
    %v74 = vsel %vm66, %v72, -1e+30
    %vm75 = vcmask 58368
    %v76 = vsel %vm75, %v74, -inf
    %77 = vmax.xlane.f32.xlu0 %v76
    %v78 = vpop.xlane.xlu0 %77
    %v79 = vsub.f32 %v74, %v78
    %v80 = vmul.f32 %v79, 1.442695
    %v81 = vpow.pop %v80
    %v82 = vsel %vm66, 1, 0
    %v83 = vcvt.s32.f32 %v82
    %v84 = vmul.f32 %v81, %v83
    %v85 = vsel %vm75, %v84, 0.0
    %86 = vadd.xlane.f32.xlu0 %v85
    %v87 = vpop.xlane.xlu0 %86
    %v88 = vmax.f32 %v87, 1e-30
    %v89 = vrcp.pop %v88
    %v90 = vmul.f32 %v88, %v89
    %v91 = vsub.f32 1.0, %v90
    %v92 = vmul.f32 %v89, %v91
    %v93 = vadd.f32 %v89, %v92
    %vm94 = vweird.f32 %v88
    %vm95 = vweird.f32 %v89
    %vm96 = vmor %vm94, %vm95
    %v97 = vsel %vm96, %v89, %v93
    %v98 = vand.u32 2147483647, %v88
    %vm99 = vcmp.eq.f32.partialorder %v98, 8.507059e+37
    %v100 = vand.u32 %v88, 2147483648
    %v101 = vor.u32 1.1754944e-38, %v100
    %v102 = vsel %vm99, %v101, %v97
    %v103 = vmul.f32 %v84, %v102
    %v104 = vperm.slane %v103, 0
    %v105 = vlaneseq
    %v106 = vshrl.u32 %v105, 7
    %108 = vset.pattern.permute.xlu0 %v106
    %109 = vperm.xlu0 %108, %v104
    %v110 = vpop.permute.xlu0 %109
    %v111 = vperm.slane %v103, 1
    %v112 = vlaneseq
    %v113 = vshrl.u32 %v112, 7
    %115 = vset.pattern.permute.xlu0 %v113
    %116 = vperm.xlu0 %115, %v111
    %v117 = vpop.permute.xlu0 %116
    %v118 = vmul.f32 %v110, %v41
    %v119 = vmul.f32 %v117, %v42
    %v120 = vsel %vm49, %v118, 0.0
    %v121 = vrot.slane %v120, 4
    %v122 = vadd.f32 %v120, %v121
    %v123 = vrot.slane %v122, 2
    %v124 = vadd.f32 %v122, %v123
    %v125 = vrot.slane %v124, 1
    %v126 = vadd.f32 %v124, %v125
    %v127 = vsel %vm49, %v119, 0.0
    %v128 = vrot.slane %v127, 4
    %v129 = vadd.f32 %v127, %v128
    %v130 = vrot.slane %v129, 2
    %v131 = vadd.f32 %v129, %v130
    %v132 = vrot.slane %v131, 1
    %v133 = vadd.f32 %v131, %v132
    %v134 = vld [vmem:[%s3] sm:$0x1]
    %v136 = vperm.slane %v134, 0
    %v138 = vmul.f32 %v126, %v136
    %v139 = vmul.f32 %v133, %v136
    %v142 = vrot.slane %v139, 7
    %v143 = vsel %vm71, %v142, %v138
    %vm145 = vcmask 254976
    %v146 = vsel %vm145, %v143, 0.0
    %147 = vadd.xlane.f32.xlu0 %v146
    %v148 = vpop.xlane.xlu0 %147
    %s149 = sld [smem:[#allocation2]]
    %v150 = vstv %s149
    %v151 = vadd.f32 %v148, %v150
    %v152 = vxor.u32 %v151, 2147483648
    %v153 = vmul.f32 %v152, 1.442695
    %v154 = vpow.pop %v153
    %v155 = vadd.f32 %v154, 1.0
    %v156 = vrcp.pop %v155
    %v157 = vmul.f32 %v155, %v156
    %v158 = vsub.f32 1.0, %v157
    %v159 = vmul.f32 %v156, %v158
    %v160 = vadd.f32 %v156, %v159
    %vm161 = vweird.f32 %v155
    %vm162 = vweird.f32 %v156
    %vm163 = vmor %vm161, %vm162
    %v164 = vsel %vm163, %v156, %v160
    %v165 = vand.u32 2147483647, %v155
    %vm166 = vcmp.eq.f32.partialorder %v165, 8.507059e+37
    %v167 = vand.u32 %v155, 2147483648
    %v168 = vor.u32 1.1754944e-38, %v167
    %v169 = vsel %vm166, %v168, %v164
    %v170 = vmul.f32 1.0, %v169
    %v172 = vperm.slane %v170, %v57
    %vm174 = vcmask 8192
    %175 = vst.msk [vmem:[#allocation6] sm:$0x1] %vm174, %v172
    %v178 = vsel %vm71, %v133, %v126
    %v180 = vmul.f32 %v170, %v178
    %181 = vst.msk [vmem:[#allocation7] sm:$0x3] %vm145, %v180
    // Predicated region
    $region26: #{tpu_custom_call.1} parent=1 // pred_check
      _
    $region27: #{tpu_custom_call.1} parent=1 // pred_check_branch
      %183 = sbr.rel (0) target = $region29
    $region28: #{tpu_custom_call.1} parent=1 // pred_region
      %185 = vsyncadd [#allocation5], 0
      %s187 = sshll.u32 [#allocation6], 4
      %s188 = int_to_ptr.vmem [resolvable:$true] %s187
      %s189 = sshll.u32 %s5, 4
      %s190 = int_to_ptr.hbm [resolvable:$true] %s189
      %192 = dma.vmem_to_hbm [thread:$0]  %s188, 16, %s190, [#allocation5]
    $region29: #{tpu_custom_call.1} parent=1 // pred_fallthru
      _
    // Predicated region
    $region30: #{tpu_custom_call.1} parent=1 // pred_check
      _
    $region31: #{tpu_custom_call.1} parent=1 // pred_check_branch
      %194 = sbr.rel (0) target = $region33
    $region32: #{tpu_custom_call.1} parent=1 // pred_region
      %196 = vsyncadd [#allocation8], 0
      %s198 = sshll.u32 [#allocation7], 4
      %s199 = int_to_ptr.vmem [resolvable:$true] %s198
      %s200 = sshll.u32 %s6, 4
      %s201 = int_to_ptr.hbm [resolvable:$true] %s200
      %203 = dma.vmem_to_hbm [thread:$0]  %s199, 32, %s201, [#allocation8]
    $region33: #{tpu_custom_call.1} parent=1 // pred_fallthru
      _
    // Predicated region
    $region34: #{tpu_custom_call.1} parent=1 // pred_check
      _
    $region35: #{tpu_custom_call.1} parent=1 // pred_check_branch
      %205 = sbr.rel (0) target = $region37
    $region36: #{tpu_custom_call.1} parent=1 // pred_region
      %207 = dma.done [#allocation5], 16
    $region37: #{tpu_custom_call.1} parent=1 // pred_fallthru
      _
    // Predicated region
    $region38: #{tpu_custom_call.1} parent=1 // pred_check
      _
    $region39: #{tpu_custom_call.1} parent=1 // pred_check_branch
      %209 = sbr.rel (0) target = $region41
    $region40: #{tpu_custom_call.1} parent=1 // pred_region
      %211 = dma.done [#allocation8], 32
    $region41: #{tpu_custom_call.1} parent=1 // pred_fallthru
      _
    %212 = vsyncpa [#allocation4], 1
    %213 = vsyncpa [#allocation5], 1
    %214 = vsyncpa [#allocation8], 1

</llo_original>
